<compile_context>
chip_gen: v7x
topology: tpu7x:2x2x1
jax: 0.10.0
libtpu: 0.0.40
codegen_flags: <defaults>
</compile_context>

<pallas_src>
import functools

import jax
import jax.numpy as jnp
import numpy as np
from jax.experimental import pallas as pl
from jax.experimental.pallas import tpu as pltpu


def _round_up(x: int, m: int) -> int:
    return (x + m - 1) // m * m


def _chip_vmem_bytes() -> int:
    """Per-TensorCore VMEM capacity; conservative 64 MiB (v7x) fallback."""
    try:
        info = pltpu.get_tpu_info()
        v = int(getattr(info, "vmem_capacity_bytes", 0) or 0)
        if v > 0:
            return v
    except Exception:
        pass
    return 64 << 20


@functools.lru_cache(maxsize=None)
def _single_buffer_supported() -> bool:
    """Probe once whether BlockSpec(pipeline_mode=pl.Buffered(1)) lowers/runs."""
    if not hasattr(pl, "Buffered"):
        return False

    def _copy(x_ref, o_ref):
        o_ref[...] = x_ref[...]

    try:
        spec = pl.BlockSpec((8, 128), lambda i: (0, 0),
                            pipeline_mode=pl.Buffered(1))
        fn = pl.pallas_call(
            _copy,
            out_shape=jax.ShapeDtypeStruct((8, 128), jnp.float32),
            grid=(1,),
            in_specs=[spec],
            out_specs=pl.BlockSpec((8, 128), lambda i: (0, 0)),
        )
        jax.block_until_ready(fn(jnp.zeros((8, 128), jnp.float32)))
        return True
    except Exception:
        return False


def _choose_tile(n: int, cap: int) -> int:
    """8-aligned row tile: small padded tail, MXU-friendly, >=2 grid steps."""
    if n < 8:
        return n                                   # single full-extent block
    cap = max(8, min(int(cap), 1024))
    limit = min(cap, _round_up(n, 8))
    cands = [t for t in (512, 256, 128, 64, 32, 16, 8) if t <= limit]
    budget = max(16, n // 8)                       # tolerate <= ~12.5% padded rows
    tile = next((t for t in cands if _round_up(n, t) - n <= budget),
                min(cands, key=lambda t: _round_up(n, t) - n))
    # v7x has 2 TensorCores: keep >= 2 steps on the 'parallel' row axis.
    while tile > 8 and pl.cdiv(n, tile) < 2:
        tile //= 2
    return tile


def _mlp_kernel(x_ref, w1_ref, b1_ref, w2_ref, b2_ref, o_ref):
    # Fused relu(x @ W1 + b1) @ W2 + b2 on one row-tile; weights stay resident.
    x = x_ref[...].astype(jnp.bfloat16)            # VPU cast, hidden under MXU
    h = jnp.dot(x, w1_ref[...], preferred_element_type=jnp.float32)
    h = jnp.maximum(h + b1_ref[...], 0.0)          # f32 bias add + ReLU
    out = jnp.dot(h.astype(w2_ref.dtype), w2_ref[...],
                  preferred_element_type=jnp.float32)
    o_ref[...] = (out + b2_ref[...]).astype(o_ref.dtype)


@functools.partial(
    jax.jit,
    static_argnames=("tile_m", "out_dtype", "single_buffer_weights"))
def compound_encoder(x, w1, b1, w2, b2, *, tile_m=None,
                     out_dtype=jnp.float32, single_buffer_weights=False):
    """Pallas fused MLP: relu(x @ w1 + b1) @ w2 + b2.

    x:  [N, fp_size]   (any N, any float dtype; cast to bf16 in-kernel)
    w1: [fp_size, hidden] bf16    b1: [1, hidden] f32
    w2: [hidden, emb]     bf16    b2: [1, emb]    f32
    returns [N, emb] in `out_dtype` (f32 default; bf16 halves writeback on v5e)
    """
    n, d_in = x.shape
    d_hid = w1.shape[1]
    d_out = w2.shape[1]

    chip_vmem = _chip_vmem_bytes()
    vmem_cap = int(0.85 * chip_vmem)
    if tile_m is None:
        # 128 MiB chips (v5e/v6e) afford a bigger row tile; v7x (64 MiB) -> 256.
        tile_m = 512 if chip_vmem >= (96 << 20) else 256
    tile = _choose_tile(n, tile_m)
    grid = (pl.cdiv(n, tile),)                     # ragged tail = boundary block

    out_itemsize = np.dtype(out_dtype).itemsize

    # --- VMEM accounting: resident weights (x2 unless single-buffered),
    #     double-buffered x/out stream tiles, f32 intermediates. ---
    w_copies = 1 if single_buffer_weights else 2
    bytes_weights = w_copies * (w1.size * w1.dtype.itemsize
                                + w2.size * w2.dtype.itemsize
                                + b1.size * b1.dtype.itemsize
                                + b2.size * b2.dtype.itemsize)
    bytes_stream = (2 * tile * d_in * x.dtype.itemsize
                    + 2 * tile * d_out * out_itemsize)
    bytes_interm = tile * d_in * 2 + tile * d_hid * 4 + tile * d_out * 4
    vmem_limit = min(vmem_cap,
                     max(32 << 20,
                         int(1.4 * (bytes_weights + bytes_stream + bytes_interm))))

    cost = pl.CostEstimate(
        flops=2 * n * (d_in * d_hid + d_hid * d_out),
        transcendentals=0,
        bytes_accessed=(x.size * x.dtype.itemsize
                        + w1.size * w1.dtype.itemsize
                        + w2.size * w2.dtype.itemsize
                        + b1.size * b1.dtype.itemsize
                        + b2.size * b2.dtype.itemsize
                        + n * d_out * out_itemsize),
    )

    # Constant-index resident operands: single-buffer them when supported so a
    # real-size bf16 W1 (16-32 MiB) isn't doubled inside v7x's 64 MiB VMEM.
    resident = dict(pipeline_mode=pl.Buffered(1)) if single_buffer_weights else {}

    out = pl.pallas_call(
        _mlp_kernel,
        out_shape=jax.ShapeDtypeStruct((n, d_out), out_dtype),
        grid_spec=pltpu.PrefetchScalarGridSpec(
            num_scalar_prefetch=0,
            grid=grid,
            in_specs=[
                pl.BlockSpec((tile, d_in), lambda i: (i, 0)),          # x stream
                pl.BlockSpec((d_in, d_hid), lambda i: (0, 0), **resident),  # W1
                pl.BlockSpec((1, d_hid), lambda i: (0, 0), **resident),     # b1
                pl.BlockSpec((d_hid, d_out), lambda i: (0, 0), **resident), # W2
                pl.BlockSpec((1, d_out), lambda i: (0, 0), **resident),     # b2
            ],
            out_specs=pl.BlockSpec((tile, d_out), lambda i: (i, 0)),
        ),
        compiler_params=pltpu.CompilerParams(
            dimension_semantics=("parallel",),
            vmem_limit_bytes=vmem_limit),
        cost_estimate=cost,
    )(x, w1, b1, w2, b2)
    return out


def prepare_clamp_params(w1, b1, w2, b2):
    """One-time (model-load) parameter prep.

    Casting W1/W2 to bf16 here keeps the per-call path free of full-weight
    HBM read+write passes.  Biases may come as (d,) or (1, d) and are
    normalized to (1, d) float32.
    """
    w1b = jnp.asarray(w1, dtype=jnp.bfloat16)
    w2b = jnp.asarray(w2, dtype=jnp.bfloat16)
    b1f = jnp.asarray(b1, dtype=jnp.float32).reshape(1, -1)
    b2f = jnp.asarray(b2, dtype=jnp.float32).reshape(1, -1)
    return w1b, b1f, w2b, b2f


def clamp_forward(inp, params, batch_size=256):
    """Mirror of ClampBaseClass.forward (eval mode, dropout inactive).

    The torch chunk-and-concat loop is folded into the Pallas row grid:
    one kernel launch, identical math.  `batch_size` kept for API compat.
    """
    del batch_size
    w1b, b1f, w2b, b2f = params
    return compound_encoder(
        inp, w1b, b1f, w2b, b2f,
        single_buffer_weights=_single_buffer_supported())


if __name__ == "__main__":
    # Small, TPU-tile-friendly stand-ins for (4096-bit fp -> hidden -> 768 emb).
    FP_SIZE = 512     # stands in for the 4096-bit compound fingerprint
    HIDDEN = 256
    EMB = 128         # stands in for the 768-d CLAMP embedding
    N = 300           # deliberately NOT a multiple of the row tile

    key = jax.random.PRNGKey(0)
    kx, k1, k2, k3, k4 = jax.random.split(key, 5)

    x = jax.random.normal(kx, (N, FP_SIZE), dtype=jnp.float32)
    w1 = jax.random.normal(k1, (FP_SIZE, HIDDEN), dtype=jnp.float32) * 0.02
    b1 = jax.random.normal(k2, (HIDDEN,), dtype=jnp.float32) * 0.01     # (d,) bias
    w2 = jax.random.normal(k3, (HIDDEN, EMB), dtype=jnp.float32) * 0.02
    b2 = jax.random.normal(k4, (1, EMB), dtype=jnp.float32) * 0.01      # (1, d) bias

    params = prepare_clamp_params(w1, b1, w2, b2)   # model-load-time casts
    out = jax.block_until_ready(clamp_forward(x, params))

    # Reference with the same bf16-operand / f32-accumulate recipe.
    w1b, b1f, w2b, b2f = params
    h_ref = jnp.maximum(
        jnp.dot(x.astype(jnp.bfloat16), w1b,
                preferred_element_type=jnp.float32) + b1f, 0.0)
    ref = jnp.dot(h_ref.astype(jnp.bfloat16), w2b,
                  preferred_element_type=jnp.float32) + b2f

    assert out.shape == (N, EMB), out.shape
    max_err = float(jnp.max(jnp.abs(out - ref)))
    assert jnp.allclose(out, ref, atol=1e-2, rtol=1e-2), max_err

    print("KERNEL_OK")
</pallas_src>

<mosaic_0001>
module attributes {stable_mosaic.version = 11 : i64} {
  func.func @_copy(%arg0: i32, %arg1: memref<8x128xf32, #tpu.memory_space<vmem>>, %arg2: memref<8x128xf32, #tpu.memory_space<vmem>>) attributes {dimension_semantics = [#tpu.dimension_semantics<arbitrary>], iteration_bounds = array<i64: 1>, scalar_prefetch = 0 : i64, scratch_operands = 0 : i64, tpu.core_type = #tpu.core_type<tc>, window_params = [{pipeline_mode = #tpu.pipeline_mode<synchronous>, transform_indices = @transform_0, window_bounds = array<i64: 8, 128>}, {pipeline_mode = #tpu.pipeline_mode<synchronous>, transform_indices = @transform_1, window_bounds = array<i64: 8, 128>}]} {
    %c0 = arith.constant 0 : index
    %c0_0 = arith.constant 0 : index
    %0 = vector.load %arg1[%c0, %c0_0] : memref<8x128xf32, #tpu.memory_space<vmem>>, vector<8x128xf32>
    %c0_1 = arith.constant 0 : index
    %c0_2 = arith.constant 0 : index
    %1 = vector.load %arg2[%c0_1, %c0_2] : memref<8x128xf32, #tpu.memory_space<vmem>>, vector<8x128xf32>
    tpu.vector_store %arg2[%c0_1, %c0_2], %0 {strides = array<i32>} : memref<8x128xf32, #tpu.memory_space<vmem>>, vector<8x128xf32>,
    return
  }
  func.func @transform_0(%arg0: i32) -> (i32, i32) {
    %c0_i32 = arith.constant 0 : i32
    %c0_i32_0 = arith.constant 0 : i32
    %c0_i32_1 = arith.constant 0 : i32
    return %c0_i32, %c0_i32_0 : i32, i32
  }
  func.func @transform_1(%arg0: i32) -> (i32, i32) {
    %c0_i32 = arith.constant 0 : i32
    %c0_i32_0 = arith.constant 0 : i32
    %c0_i32_1 = arith.constant 0 : i32
    return %c0_i32, %c0_i32_0 : i32, i32
  }
}

module attributes {stable_mosaic.version = 11 : i64} {
  func.func @_mlp_kernel(%arg0: i32, %arg1: memref<64x512xf32, #tpu.memory_space<vmem>>, %arg2: memref<512x256xbf16, #tpu.memory_space<vmem>>, %arg3: memref<1x256xf32, #tpu.memory_space<vmem>>, %arg4: memref<256x128xbf16, #tpu.memory_space<vmem>>, %arg5: memref<1x128xf32, #tpu.memory_space<vmem>>, %arg6: memref<64x128xf32, #tpu.memory_space<vmem>>) attributes {dimension_semantics = [#tpu.dimension_semantics<parallel>], iteration_bounds = array<i64: 5>, scalar_prefetch = 0 : i64, scratch_operands = 0 : i64, tpu.core_type = #tpu.core_type<tc>, window_params = [{transform_indices = @transform_0, window_bounds = array<i64: 64, 512>}, {pipeline_mode = #tpu.pipeline_mode<synchronous>, transform_indices = @transform_1, window_bounds = array<i64: 512, 256>}, {pipeline_mode = #tpu.pipeline_mode<synchronous>, transform_indices = @transform_2, window_bounds = array<i64: 1, 256>}, {pipeline_mode = #tpu.pipeline_mode<synchronous>, transform_indices = @transform_3, window_bounds = array<i64: 256, 128>}, {pipeline_mode = #tpu.pipeline_mode<synchronous>, transform_indices = @transform_4, window_bounds = array<i64: 1, 128>}, {transform_indices = @transform_5, window_bounds = array<i64: 64, 128>}]} {
    %c0 = arith.constant 0 : index
    %c0_0 = arith.constant 0 : index
    %0 = vector.load %arg1[%c0, %c0_0] : memref<64x512xf32, #tpu.memory_space<vmem>>, vector<64x512xf32>
    %1 = arith.truncf %0 : vector<64x512xf32> to vector<64x512xbf16>
    %c0_1 = arith.constant 0 : index
    %c0_2 = arith.constant 0 : index
    %2 = vector.load %arg2[%c0_1, %c0_2] : memref<512x256xbf16, #tpu.memory_space<vmem>>, vector<512x256xbf16>
    %cst = arith.constant dense<0.000000e+00> : vector<64x256xf32>
    %3 = tpu.matmul %1, %2, %cst {dimension_numbers = #tpu.dot_dimension_numbers<[1], [0], [0], [1], [0, 0, 1, 1], [], []>} : vector<64x512xbf16>, vector<512x256xbf16>, vector<64x256xf32> -> vector<64x256xf32>
    %c0_3 = arith.constant 0 : index
    %c0_4 = arith.constant 0 : index
    %4 = vector.load %arg3[%c0_3, %c0_4] : memref<1x256xf32, #tpu.memory_space<vmem>>, vector<1x256xf32>
    %5 = vector.broadcast %4 : vector<1x256xf32> to vector<64x256xf32>
    %6 = arith.addf %3, %5 : vector<64x256xf32>
    %cst_5 = arith.constant 0.000000e+00 : f32
    %7 = vector.broadcast %cst_5 : f32 to vector<64x256xf32>
    %8 = arith.maximumf %6, %7 : vector<64x256xf32>
    %9 = arith.truncf %8 : vector<64x256xf32> to vector<64x256xbf16>
    %c0_6 = arith.constant 0 : index
    %c0_7 = arith.constant 0 : index
    %10 = vector.load %arg4[%c0_6, %c0_7] : memref<256x128xbf16, #tpu.memory_space<vmem>>, vector<256x128xbf16>
    %cst_8 = arith.constant dense<0.000000e+00> : vector<64x128xf32>
    %11 = tpu.matmul %9, %10, %cst_8 {dimension_numbers = #tpu.dot_dimension_numbers<[1], [0], [0], [1], [0, 0, 1, 1], [], []>} : vector<64x256xbf16>, vector<256x128xbf16>, vector<64x128xf32> -> vector<64x128xf32>
    %c0_9 = arith.constant 0 : index
    %c0_10 = arith.constant 0 : index
    %12 = vector.load %arg5[%c0_9, %c0_10] : memref<1x128xf32, #tpu.memory_space<vmem>>, vector<1x128xf32>
    %13 = vector.broadcast %12 : vector<1x128xf32> to vector<64x128xf32>
    %14 = arith.addf %11, %13 : vector<64x128xf32>
    %c0_11 = arith.constant 0 : index
    %c0_12 = arith.constant 0 : index
    %15 = vector.load %arg6[%c0_11, %c0_12] : memref<64x128xf32, #tpu.memory_space<vmem>>, vector<64x128xf32>
    tpu.vector_store %arg6[%c0_11, %c0_12], %14 {strides = array<i32>} : memref<64x128xf32, #tpu.memory_space<vmem>>, vector<64x128xf32>,
    return
  }
  func.func @transform_0(%arg0: i32) -> (i32, i32) {
    %c0_i32 = arith.constant 0 : i32
    %c0_i32_0 = arith.constant 0 : i32
    return %arg0, %c0_i32 : i32, i32
  }
  func.func @transform_1(%arg0: i32) -> (i32, i32) {
    %c0_i32 = arith.constant 0 : i32
    %c0_i32_0 = arith.constant 0 : i32
    %c0_i32_1 = arith.constant 0 : i32
    return %c0_i32, %c0_i32_0 : i32, i32
  }
  func.func @transform_2(%arg0: i32) -> (i32, i32) {
    %c0_i32 = arith.constant 0 : i32
    %c0_i32_0 = arith.constant 0 : i32
    %c0_i32_1 = arith.constant 0 : i32
    return %c0_i32, %c0_i32_0 : i32, i32
  }
  func.func @transform_3(%arg0: i32) -> (i32, i32) {
    %c0_i32 = arith.constant 0 : i32
    %c0_i32_0 = arith.constant 0 : i32
    %c0_i32_1 = arith.constant 0 : i32
    return %c0_i32, %c0_i32_0 : i32, i32
  }
  func.func @transform_4(%arg0: i32) -> (i32, i32) {
    %c0_i32 = arith.constant 0 : i32
    %c0_i32_0 = arith.constant 0 : i32
    %c0_i32_1 = arith.constant 0 : i32
    return %c0_i32, %c0_i32_0 : i32, i32
  }
  func.func @transform_5(%arg0: i32) -> (i32, i32) {
    %c0_i32 = arith.constant 0 : i32
    %c0_i32_0 = arith.constant 0 : i32
    return %arg0, %c0_i32 : i32, i32
  }
}

</mosaic_0001>

<llo_original>
// kernel: tpu_custom_call.1
$region0: #{tpu_custom_call.1}
  #allocation0 [shape = 'u32[]', space=smem, size = 0x4, offset = 0x4, fixed_abs, tag = 'smem constant byte address 0x4 - core index']
  #allocation1 [shape = 'u32[144,128]{1,0:T(1,128)}', space=vmem, size = 0x12000, scoped, tag = 'internal scratch']
  %s0 = inlined_call_operand.hbm [shape: f32[8,128], index: 0, kind: input, shape index: {}]
  %s1 = inlined_call_operand.hbm [shape: f32[8,128], index: 1, kind: output, shape index: {}]
  %s2 = sld [smem:[#allocation0]]
  $region18: #{tpu_custom_call.1} parent=0
    _
  %s4 = ssub.s32 1, %s2
  %s5 = scalar_select 0, %s4, %s2
  $region1: #{tpu_custom_call.1} parent=0
    #allocation2 [shape = 'u8[4096]{0}', space=vmem, size = 0x1000, scoped, tag = 'input window, operand 0, single buffered']
    #allocation3 [shape = 's32[1]{0}', space=sflag, size = 0x4, scoped, tag = 'scoped memory for tpu_custom_call.1']
    #allocation4 [shape = 's32[1]{0}', space=sflag, size = 0x4, scoped, tag = 'scoped memory for tpu_custom_call.1']
    #allocation5 [shape = 'u8[4096]{0}', space=vmem, size = 0x1000, scoped, tag = 'output window, operand 0, single buffered']
    %6 = vsyncpa [#allocation3], 0
    %7 = vsyncpa [#allocation4], 0
    // Predicated region
    $region2: #{tpu_custom_call.1} parent=1 // pred_check
      _
    $region3: #{tpu_custom_call.1} parent=1 // pred_check_branch
      %9 = sbr.rel (0) target = $region5
    $region4: #{tpu_custom_call.1} parent=1 // pred_region
      %s11 = ssub.s32 128, 128
      %12 = vsyncadd [#allocation3], %s11
      %s14 = sshll.u32 [#allocation2], 4
      %s15 = int_to_ptr.vmem [resolvable:$true] %s14
      %17 = dma.hbm_to_vmem [thread:$0]  %s0, 128, %s15, [#allocation3]
    $region5: #{tpu_custom_call.1} parent=1 // pred_fallthru
      _
    // Predicated region
    $region6: #{tpu_custom_call.1} parent=1 // pred_check
      _
    $region7: #{tpu_custom_call.1} parent=1 // pred_check_branch
      %19 = sbr.rel (0) target = $region9
    $region8: #{tpu_custom_call.1} parent=1 // pred_region
      %20 = dma.done [#allocation3], 128
    $region9: #{tpu_custom_call.1} parent=1 // pred_fallthru
      _
    %v21 = vld [vmem:[#allocation2] sm:$0xff]
    %22 = vst [vmem:[#allocation5] sm:$0xff] %v21
    // Predicated region
    $region10: #{tpu_custom_call.1} parent=1 // pred_check
      _
    $region11: #{tpu_custom_call.1} parent=1 // pred_check_branch
      %24 = sbr.rel (0) target = $region13
    $region12: #{tpu_custom_call.1} parent=1 // pred_region
      %s26 = ssub.s32 128, 128
      %27 = vsyncadd [#allocation4], %s26
      %s29 = sshll.u32 [#allocation5], 4
      %s30 = int_to_ptr.vmem [resolvable:$true] %s29
      %32 = dma.vmem_to_hbm [thread:$0]  %s30, 128, %s1, [#allocation4]
    $region13: #{tpu_custom_call.1} parent=1 // pred_fallthru
      _
    // Predicated region
    $region14: #{tpu_custom_call.1} parent=1 // pred_check
      _
    $region15: #{tpu_custom_call.1} parent=1 // pred_check_branch
      %34 = sbr.rel (0) target = $region17
    $region16: #{tpu_custom_call.1} parent=1 // pred_region
      %35 = dma.done [#allocation4], 128
    $region17: #{tpu_custom_call.1} parent=1 // pred_fallthru
      _
    %36 = vsyncpa [#allocation3], 1
    %37 = vsyncpa [#allocation4], 1

// kernel: compound_encoder.1
$region0: #{compound_encoder.1}
  #allocation0 [shape = 'u32[]', space=smem, size = 0x4, offset = 0x4, fixed_abs, tag = 'smem constant byte address 0x4 - core index']
  #allocation1 [shape = 'u32[144,128]{1,0:T(1,128)}', space=vmem, size = 0x12000, scoped, tag = 'internal scratch']
  %s0 = inlined_call_operand.hbm [shape: f32[300,512], index: 0, kind: input, shape index: {}]
  %s1 = inlined_call_operand.hbm [shape: bf16[512,256], index: 1, kind: input, shape index: {}]
  %s2 = inlined_call_operand.vmem [shape: f32[1,256], index: 2, kind: input, shape index: {}]
  %s3 = inlined_call_operand.hbm [shape: bf16[256,128], index: 3, kind: input, shape index: {}]
  %s4 = inlined_call_operand.vmem [shape: f32[1,128], index: 4, kind: input, shape index: {}]
  %s5 = inlined_call_operand.hbm [shape: f32[300,128], index: 5, kind: output, shape index: {}]
  %s6 = sld [smem:[#allocation0]]
  $region65: #{compound_encoder.1} parent=0
    _
  %s8 = ssub.s32 1, %s6
  %s9 = scalar_select 0, %s8, %s6
  $region1: #{compound_encoder.1} parent=0
    #allocation2 [shape = 'u8[262144]{0}', space=vmem, size = 0x40000, scoped, tag = 'input window, operand 0']
    #allocation3 [shape = 's32[2]{0}', space=sflag, size = 0x8, scoped, tag = 'scoped memory for compound_encoder.1']
    #allocation4 [shape = 's32[2]{0}', space=sflag, size = 0x8, scoped, tag = 'scoped memory for compound_encoder.1']
    #allocation5 [shape = 'u8[262144]{0}', space=vmem, size = 0x40000, scoped, tag = 'input window, operand 1, single buffered']
    #allocation6 [shape = 's32[1]{0}', space=sflag, size = 0x4, scoped, tag = 'scoped memory for compound_encoder.1']
    #allocation7 [shape = 'u8[65536]{0}', space=vmem, size = 0x10000, scoped, tag = 'input window, operand 3, single buffered']
    #allocation8 [shape = 'u8[65536]{0}', space=vmem, size = 0x10000, scoped, tag = 'output window, operand 0']
    %10 = vsyncpa [#allocation3], 0
    %s11 = scalar_lea.sflag [#allocation3], 1
    %12 = vsyncpa %s11, 0
    %13 = vsyncpa [#allocation6], 0
    %14 = vsyncpa [#allocation4], 0
    %s15 = scalar_lea.sflag [#allocation4], 1
    %16 = vsyncpa %s15, 0
    loop: start=0, step=1, limit=7
    $region2: #{compound_encoder.1} parent=1 // loop_pre_header
      _
    $region3: #{compound_encoder.1} parent=1 // loop_header
      %s18 = sphi 0, %s22
      %p19 = scmp.ge.s32.totalorder %s18, 7
      %s28 = sphi 0, %s30
      %s31 = sphi 0, %s28
      %s32 = sphi 0, %s31
      %s48 = sphi 0, %s32
      %s52 = sphi 0, %s52
      %s54 = sphi 0, %s52
      %s55 = sphi 0, %s54
      %s69 = sphi 0, %s55
      %s73 = sphi 0, %s73
      %s75 = sphi 0, %s73
      %s76 = sphi 0, %s75
      %s90 = sphi 0, %s76
      %s94 = sphi 0, %s94
      %s96 = sphi 0, %s94
      %s97 = sphi 0, %s96
      %s111 = sphi 0, %s97
      %s115 = sphi 0, %s115
      %s117 = sphi 0, %s115
      %s118 = sphi 0, %s117
      %s132 = sphi 0, %s118
      %s138 = sphi 0, %s140
      %s141 = sphi 0, %s138
      %s142 = sphi 0, %s141
      %s158 = sphi 0, %s142
    $region4: #{compound_encoder.1} parent=1 // loop_header_branch
      %21 = sbr.rel (%p19) target = $region8
    $region5: #{compound_encoder.1} parent=1 // loop_body
      %s23 = ssub.s32 %s18, 1
      %s24 = ssub.s32 %s18, 2
      %s25 = sadd.s32 %s18, 1
      %s26 = ssub.s32 %s18, %s25
      %p27 = scmp.eq.s32.totalorder %s26, 0
      %s29 = sadd.s32 %s28, 1
      %s30 = scalar_select %p27, %s28, %s29
      %p33 = pneg %p27
      %p34 = scmp.eq.s32.totalorder %s18, 4
      %p35 = por %p33, %p34
      %p36 = scmp.ne.s32.totalorder %s28, %s31
      %p37 = scmp.eq.s32.totalorder %s18, 0
      %p38 = por %p36, %p37
      %p39 = scmp.ne.s32.totalorder %s28, %s31
      %p40 = scmp.eq.s32.totalorder %s23, 4
      %p41 = por %p39, %p40
      %p42 = scmp.ne.s32.totalorder %s31, %s32
      %p43 = scmp.eq.s32.totalorder %s23, 0
      %p44 = por %p42, %p43
      %p45 = scmp.ne.s32.totalorder %s31, %s32
      %p46 = scmp.eq.s32.totalorder %s24, 4
      %p47 = por %p45, %p46
      %p49 = scmp.ne.s32.totalorder %s32, %s48
      %p50 = scmp.eq.s32.totalorder %s24, 0
      %p51 = por %p49, %p50
      %s53 = sadd.s32 %s52, 1
      %p56 = scmp.eq.s32.totalorder %s18, 4
      %p57 = scmp.ne.s32.totalorder %s52, %s54
      %p58 = scmp.eq.s32.totalorder %s18, 0
      %p59 = por %p57, %p58
      %p60 = scmp.ne.s32.totalorder %s52, %s54
      %p61 = scmp.eq.s32.totalorder %s23, 4
      %p62 = por %p60, %p61
      %p63 = scmp.ne.s32.totalorder %s54, %s55
      %p64 = scmp.eq.s32.totalorder %s23, 0
      %p65 = por %p63, %p64
      %p66 = scmp.ne.s32.totalorder %s54, %s55
      %p67 = scmp.eq.s32.totalorder %s24, 4
      %p68 = por %p66, %p67
      %p70 = scmp.ne.s32.totalorder %s55, %s69
      %p71 = scmp.eq.s32.totalorder %s24, 0
      %p72 = por %p70, %p71
      %s74 = sadd.s32 %s73, 1
      %p77 = scmp.eq.s32.totalorder %s18, 4
      %p78 = scmp.ne.s32.totalorder %s73, %s75
      %p79 = scmp.eq.s32.totalorder %s18, 0
      %p80 = por %p78, %p79
      %p81 = scmp.ne.s32.totalorder %s73, %s75
      %p82 = scmp.eq.s32.totalorder %s23, 4
      %p83 = por %p81, %p82
      %p84 = scmp.ne.s32.totalorder %s75, %s76
      %p85 = scmp.eq.s32.totalorder %s23, 0
      %p86 = por %p84, %p85
      %p87 = scmp.ne.s32.totalorder %s75, %s76
      %p88 = scmp.eq.s32.totalorder %s24, 4
      %p89 = por %p87, %p88
      %p91 = scmp.ne.s32.totalorder %s76, %s90
      %p92 = scmp.eq.s32.totalorder %s24, 0
      %p93 = por %p91, %p92
      %s95 = sadd.s32 %s94, 1
      %p98 = scmp.eq.s32.totalorder %s18, 4
      %p99 = scmp.ne.s32.totalorder %s94, %s96
      %p100 = scmp.eq.s32.totalorder %s18, 0
      %p101 = por %p99, %p100
      %p102 = scmp.ne.s32.totalorder %s94, %s96
      %p103 = scmp.eq.s32.totalorder %s23, 4
      %p104 = por %p102, %p103
      %p105 = scmp.ne.s32.totalorder %s96, %s97
      %p106 = scmp.eq.s32.totalorder %s23, 0
      %p107 = por %p105, %p106
      %p108 = scmp.ne.s32.totalorder %s96, %s97
      %p109 = scmp.eq.s32.totalorder %s24, 4
      %p110 = por %p108, %p109
      %p112 = scmp.ne.s32.totalorder %s97, %s111
      %p113 = scmp.eq.s32.totalorder %s24, 0
      %p114 = por %p112, %p113
      %s116 = sadd.s32 %s115, 1
      %p119 = scmp.eq.s32.totalorder %s18, 4
      %p120 = scmp.ne.s32.totalorder %s115, %s117
      %p121 = scmp.eq.s32.totalorder %s18, 0
      %p122 = por %p120, %p121
      %p123 = scmp.ne.s32.totalorder %s115, %s117
      %p124 = scmp.eq.s32.totalorder %s23, 4
      %p125 = por %p123, %p124
      %p126 = scmp.ne.s32.totalorder %s117, %s118
      %p127 = scmp.eq.s32.totalorder %s23, 0
      %p128 = por %p126, %p127
      %p129 = scmp.ne.s32.totalorder %s117, %s118
      %p130 = scmp.eq.s32.totalorder %s24, 4
      %p131 = por %p129, %p130
      %p133 = scmp.ne.s32.totalorder %s118, %s132
      %p134 = scmp.eq.s32.totalorder %s24, 0
      %p135 = por %p133, %p134
      %s136 = ssub.s32 %s18, %s25
      %p137 = scmp.eq.s32.totalorder %s136, 0
      %s139 = sadd.s32 %s138, 1
      %s140 = scalar_select %p137, %s138, %s139
      %p143 = pneg %p137
      %p144 = scmp.eq.s32.totalorder %s18, 4
      %p145 = por %p143, %p144
      %p146 = scmp.ne.s32.totalorder %s138, %s141
      %p147 = scmp.eq.s32.totalorder %s18, 0
      %p148 = por %p146, %p147
      %p149 = scmp.ne.s32.totalorder %s138, %s141
      %p150 = scmp.eq.s32.totalorder %s23, 4
      %p151 = por %p149, %p150
      %p152 = scmp.ne.s32.totalorder %s141, %s142
      %p153 = scmp.eq.s32.totalorder %s23, 0
      %p154 = por %p152, %p153
      %p155 = scmp.ne.s32.totalorder %s141, %s142
      %p156 = scmp.eq.s32.totalorder %s24, 4
      %p157 = por %p155, %p156
      %p159 = scmp.ne.s32.totalorder %s142, %s158
      %p160 = scmp.eq.s32.totalorder %s24, 0
      %p161 = por %p159, %p160
      %p162 = scmp.le.s32.totalorder 1, %s18
      %p163 = scmp.lt.s32.totalorder %s18, 6
      %p164 = pnand %p162, %p163
      %p165 = pneg %p164
      // Predicated region
      $region9: #{compound_encoder.1} parent=5 // pred_check
        _
      $region10: #{compound_encoder.1} parent=5 // pred_check_branch
        %167 = sbr.rel (%p164) target = $region12
      $region11: #{compound_encoder.1} parent=5 // pred_region
        %s168 = ssub.s32 %s18, 1
        // Predicated region
        $region13: #{compound_encoder.1} parent=11 // pred_check
          %p169 = pneg %p65
        $region14: #{compound_encoder.1} parent=11 // pred_check_branch
          %171 = sbr.rel (%p169) target = $region16
        $region15: #{compound_encoder.1} parent=11 // pred_region
          %s173 = ssub.s32 8192, 8192
          %174 = vsyncadd [#allocation6], %s173
          %s175 = sshll.u32 [#allocation5], 4
          %s176 = int_to_ptr.vmem [resolvable:$true] %s175
          %181 = dma.hbm_to_vmem [thread:$0]  %s1, 8192, %s176, [#allocation6], 128, 128, 8
        $region16: #{compound_encoder.1} parent=11 // pred_fallthru
          _
        // Predicated region
        $region17: #{compound_encoder.1} parent=11 // pred_check
          %p182 = pneg %p86
        $region18: #{compound_encoder.1} parent=11 // pred_check_branch
          %184 = sbr.rel (%p182) target = $region20
        $region19: #{compound_encoder.1} parent=11 // pred_region
          _
        $region20: #{compound_encoder.1} parent=11 // pred_fallthru
          _
        // Predicated region
        $region21: #{compound_encoder.1} parent=11 // pred_check
          %p185 = pneg %p107
        $region22: #{compound_encoder.1} parent=11 // pred_check_branch
          %187 = sbr.rel (%p185) target = $region24
        $region23: #{compound_encoder.1} parent=11 // pred_region
          %s189 = ssub.s32 2048, 2048
          %190 = vsyncadd [#allocation6], %s189
          %s191 = sshll.u32 [#allocation7], 4
          %s192 = int_to_ptr.vmem [resolvable:$true] %s191
          %197 = dma.hbm_to_vmem [thread:$0]  %s3, 2048, %s192, [#allocation6], 64, 64, 4
        $region24: #{compound_encoder.1} parent=11 // pred_fallthru
          _
        // Predicated region
        $region25: #{compound_encoder.1} parent=11 // pred_check
          %p198 = pneg %p128
        $region26: #{compound_encoder.1} parent=11 // pred_check_branch
          %200 = sbr.rel (%p198) target = $region28
        $region27: #{compound_encoder.1} parent=11 // pred_region
          _
        $region28: #{compound_encoder.1} parent=11 // pred_fallthru
          _
      $region12: #{compound_encoder.1} parent=5 // pred_fallthru
        _
      %p201 = scmp.lt.s32.totalorder %s18, 5
      // Predicated region
      $region29: #{compound_encoder.1} parent=5 // pred_check
        %p202 = pneg %p201
      $region30: #{compound_encoder.1} parent=5 // pred_check_branch
        %204 = sbr.rel (%p202) target = $region32
      $region31: #{compound_encoder.1} parent=5 // pred_region
        // Predicated region
        $region33: #{compound_encoder.1} parent=31 // pred_check
          %p205 = pneg %p38
        $region34: #{compound_encoder.1} parent=31 // pred_check_branch
          %207 = sbr.rel (%p205) target = $region36
        $region35: #{compound_encoder.1} parent=31 // pred_region
          %s208 = sand.u32 %s28, 1
          %s209 = scalar_lea.sflag [#allocation3], %s208
          %s210 = sand.u32 %s28, 1
          %s211 = smul.addr %s210, 256
          %s212 = scalar_lea.vmem [#allocation2], %s211
          %s213 = smul.u32 8, %s18
          %s214 = ssub.s32 38, %s213
          %p215 = scmp.lt.s32.totalorder %s214, 8
          %s216 = scalar_select %p215, %s214, 8
          %s217 = smul.u32 128, %s216
          %s218 = smul.u32 %s217, 4
          %s220 = ssub.s32 4096, %s218
          %221 = vsyncadd %s209, %s220
          %p222 = scmp.ne.s32.totalorder 0, %s218
          %s223 = smul.addr %s213, 4
          %s224 = smul.addr %s223, 128
          %s225 = scalar_lea.hbm %s0, %s224
          %s226 = smul.u32 32, %s216
          %s227 = sshll.u32 %s212, 4
          %s228 = int_to_ptr.vmem [resolvable:$true] %s227
          %s229 = sshll.u32 %s226, 4
          %233 = dma.hbm_to_vmem [thread:$0]  (%p222), %s225, %s229, %s228, %s209, 512, 512, 32
        $region36: #{compound_encoder.1} parent=31 // pred_fallthru
          _
      $region32: #{compound_encoder.1} parent=5 // pred_fallthru
        _
      %p234 = scmp.le.s32.totalorder 1, %s18
      %p235 = scmp.lt.s32.totalorder %s18, 6
      %p236 = pnand %p234, %p235
      %p237 = pneg %p236
      // Predicated region
      $region37: #{compound_encoder.1} parent=5 // pred_check
        _
      $region38: #{compound_encoder.1} parent=5 // pred_check_branch
        %239 = sbr.rel (%p236) target = $region40
      $region39: #{compound_encoder.1} parent=5 // pred_region
        %s240 = ssub.s32 %s18, 1
        %s241 = sand.u32 %s31, 1
        %s242 = scalar_lea.sflag [#allocation3], %s241
        %s243 = sand.u32 %s31, 1
        %s244 = smul.addr %s243, 256
        %s245 = scalar_lea.vmem [#allocation2], %s244
        // Predicated region
        $region41: #{compound_encoder.1} parent=39 // pred_check
          %p246 = pneg %p44
        $region42: #{compound_encoder.1} parent=39 // pred_check_branch
          %248 = sbr.rel (%p246) target = $region44
        $region43: #{compound_encoder.1} parent=39 // pred_region
          %249 = dma.done %s242, 4096
        $region44: #{compound_encoder.1} parent=39 // pred_fallthru
          _
        // Predicated region
        $region45: #{compound_encoder.1} parent=39 // pred_check
          %p250 = pneg %p65
        $region46: #{compound_encoder.1} parent=39 // pred_check_branch
          %252 = sbr.rel (%p250) target = $region48
        $region47: #{compound_encoder.1} parent=39 // pred_region
          %253 = dma.done [#allocation6], 8192
        $region48: #{compound_encoder.1} parent=39 // pred_fallthru
          _
        // Predicated region
        $region49: #{compound_encoder.1} parent=39 // pred_check
          %p254 = pneg %p107
        $region50: #{compound_encoder.1} parent=39 // pred_check_branch
          %256 = sbr.rel (%p254) target = $region52
        $region51: #{compound_encoder.1} parent=39 // pred_region
          %257 = dma.done [#allocation6], 2048
        $region52: #{compound_encoder.1} parent=39 // pred_fallthru
          _
        %s258 = sand.u32 %s31, 1
        %s259 = scalar_lea.sflag [#allocation3], %s258
        %s260 = sand.u32 %s31, 1
        %s261 = smul.addr %s260, 256
        %s262 = scalar_lea.vmem [#allocation2], %s261
        %p263 = pneg %p44
        %p264 = pneg %p41
        %p265 = pneg %p65
        %p266 = pneg %p62
        %p267 = pneg %p86
        %p268 = pneg %p83
        %p269 = pneg %p107
        %p270 = pneg %p104
        %p271 = pneg %p128
        %p272 = pneg %p125
        %p273 = pneg %p154
        %p274 = pneg %p151
        %s275 = sand.u32 %s141, 1
        %s276 = scalar_lea.sflag [#allocation4], %s275
        %s277 = sand.u32 %s141, 1
        %s278 = smul.addr %s277, 64
        %s279 = scalar_lea.vmem [#allocation8], %s278
        %s280 = smul.u32 8, %s23
        %s281 = ssub.s32 38, %s280
        %p282 = scmp.lt.s32.totalorder %s281, 8
        %s283 = scalar_select %p282, %s281, 8
        %s284 = smul.u32 128, %s283
        %s285 = smul.u32 %s284, 4
        %s286 = smul.u32 8, %s23
        %s287 = ssub.s32 38, %s286
        %p288 = scmp.lt.s32.totalorder %s287, 8
        %s289 = scalar_select %p288, %s287, 8
        %s290 = smul.u32 128, %s289
        %v292 = vld [vmem:[%s245] sm:$0xff]
        %v293 = vld [vmem:[%s245 + $0x8] sm:$0xff]
        %v294 = vld [vmem:[%s245 + $0x10] sm:$0xff]
        %v295 = vld [vmem:[%s245 + $0x18] sm:$0xff]
        %v296 = vld [vmem:[%s245 + $0x20] sm:$0xff]
        %v297 = vld [vmem:[%s245 + $0x28] sm:$0xff]
        %v298 = vld [vmem:[%s245 + $0x30] sm:$0xff]
        %v299 = vld [vmem:[%s245 + $0x38] sm:$0xff]
        %v300 = vld [vmem:[%s245 + $0x40] sm:$0xff]
        %v301 = vld [vmem:[%s245 + $0x48] sm:$0xff]
        %v302 = vld [vmem:[%s245 + $0x50] sm:$0xff]
        %v303 = vld [vmem:[%s245 + $0x58] sm:$0xff]
        %v304 = vld [vmem:[%s245 + $0x60] sm:$0xff]
        %v305 = vld [vmem:[%s245 + $0x68] sm:$0xff]
        %v306 = vld [vmem:[%s245 + $0x70] sm:$0xff]
        %v307 = vld [vmem:[%s245 + $0x78] sm:$0xff]
        %v308 = vld [vmem:[%s245 + $0x80] sm:$0xff]
        %v309 = vld [vmem:[%s245 + $0x88] sm:$0xff]
        %v310 = vld [vmem:[%s245 + $0x90] sm:$0xff]
        %v311 = vld [vmem:[%s245 + $0x98] sm:$0xff]
        %v312 = vld [vmem:[%s245 + $0xa0] sm:$0xff]
        %v313 = vld [vmem:[%s245 + $0xa8] sm:$0xff]
        %v314 = vld [vmem:[%s245 + $0xb0] sm:$0xff]
        %v315 = vld [vmem:[%s245 + $0xb8] sm:$0xff]
        %v316 = vld [vmem:[%s245 + $0xc0] sm:$0xff]
        %v317 = vld [vmem:[%s245 + $0xc8] sm:$0xff]
        %v318 = vld [vmem:[%s245 + $0xd0] sm:$0xff]
        %v319 = vld [vmem:[%s245 + $0xd8] sm:$0xff]
        %v320 = vld [vmem:[%s245 + $0xe0] sm:$0xff]
        %v321 = vld [vmem:[%s245 + $0xe8] sm:$0xff]
        %v322 = vld [vmem:[%s245 + $0xf0] sm:$0xff]
        %v323 = vld [vmem:[%s245 + $0xf8] sm:$0xff]
        %v324 = vpack.c.bf16 %v296, %v292
        %v325 = vpack.c.bf16 %v297, %v293
        %v326 = vpack.c.bf16 %v298, %v294
        %v327 = vpack.c.bf16 %v299, %v295
        %v328 = vpack.c.bf16 %v304, %v300
        %v329 = vpack.c.bf16 %v305, %v301
        %v330 = vpack.c.bf16 %v306, %v302
        %v331 = vpack.c.bf16 %v307, %v303
        %v332 = vpack.c.bf16 %v312, %v308
        %v333 = vpack.c.bf16 %v313, %v309
        %v334 = vpack.c.bf16 %v314, %v310
        %v335 = vpack.c.bf16 %v315, %v311
        %v336 = vpack.c.bf16 %v320, %v316
        %v337 = vpack.c.bf16 %v321, %v317
        %v338 = vpack.c.bf16 %v322, %v318
        %v339 = vpack.c.bf16 %v323, %v319
        %v340 = vld [vmem:[#allocation5] sm:$0xff]
        %v341 = vld [vmem:[#allocation5 + $0x8] sm:$0xff]
        %v342 = vld [vmem:[#allocation5 + $0x10] sm:$0xff]
        %v343 = vld [vmem:[#allocation5 + $0x18] sm:$0xff]
        %v344 = vld [vmem:[#allocation5 + $0x20] sm:$0xff]
        %v345 = vld [vmem:[#allocation5 + $0x28] sm:$0xff]
        %v346 = vld [vmem:[#allocation5 + $0x30] sm:$0xff]
        %v347 = vld [vmem:[#allocation5 + $0x38] sm:$0xff]
        %v348 = vld [vmem:[#allocation5 + $0x40] sm:$0xff]
        %v349 = vld [vmem:[#allocation5 + $0x48] sm:$0xff]
        %v350 = vld [vmem:[#allocation5 + $0x50] sm:$0xff]
        %v351 = vld [vmem:[#allocation5 + $0x58] sm:$0xff]
        %v352 = vld [vmem:[#allocation5 + $0x60] sm:$0xff]
        %v353 = vld [vmem:[#allocation5 + $0x68] sm:$0xff]
        %v354 = vld [vmem:[#allocation5 + $0x70] sm:$0xff]
        %v355 = vld [vmem:[#allocation5 + $0x78] sm:$0xff]
        %v356 = vld [vmem:[#allocation5 + $0x80] sm:$0xff]
        %v357 = vld [vmem:[#allocation5 + $0x88] sm:$0xff]
        %v358 = vld [vmem:[#allocation5 + $0x90] sm:$0xff]
        %v359 = vld [vmem:[#allocation5 + $0x98] sm:$0xff]
        %v360 = vld [vmem:[#allocation5 + $0xa0] sm:$0xff]
        %v361 = vld [vmem:[#allocation5 + $0xa8] sm:$0xff]
        %v362 = vld [vmem:[#allocation5 + $0xb0] sm:$0xff]
        %v363 = vld [vmem:[#allocation5 + $0xb8] sm:$0xff]
        %v364 = vld [vmem:[#allocation5 + $0xc0] sm:$0xff]
        %v365 = vld [vmem:[#allocation5 + $0xc8] sm:$0xff]
        %v366 = vld [vmem:[#allocation5 + $0xd0] sm:$0xff]
        %v367 = vld [vmem:[#allocation5 + $0xd8] sm:$0xff]
        %v368 = vld [vmem:[#allocation5 + $0xe0] sm:$0xff]
        %v369 = vld [vmem:[#allocation5 + $0xe8] sm:$0xff]
        %v370 = vld [vmem:[#allocation5 + $0xf0] sm:$0xff]
        %v371 = vld [vmem:[#allocation5 + $0xf8] sm:$0xff]
        %v372 = vld [vmem:[#allocation5 + $0x100] sm:$0xff]
        %v373 = vld [vmem:[#allocation5 + $0x108] sm:$0xff]
        %v374 = vld [vmem:[#allocation5 + $0x110] sm:$0xff]
        %v375 = vld [vmem:[#allocation5 + $0x118] sm:$0xff]
        %v376 = vld [vmem:[#allocation5 + $0x120] sm:$0xff]
        %v377 = vld [vmem:[#allocation5 + $0x128] sm:$0xff]
        %v378 = vld [vmem:[#allocation5 + $0x130] sm:$0xff]
        %v379 = vld [vmem:[#allocation5 + $0x138] sm:$0xff]
        %v380 = vld [vmem:[#allocation5 + $0x140] sm:$0xff]
        %v381 = vld [vmem:[#allocation5 + $0x148] sm:$0xff]
        %v382 = vld [vmem:[#allocation5 + $0x150] sm:$0xff]
        %v383 = vld [vmem:[#allocation5 + $0x158] sm:$0xff]
        %v384 = vld [vmem:[#allocation5 + $0x160] sm:$0xff]
        %v385 = vld [vmem:[#allocation5 + $0x168] sm:$0xff]
        %v386 = vld [vmem:[#allocation5 + $0x170] sm:$0xff]
        %v387 = vld [vmem:[#allocation5 + $0x178] sm:$0xff]
        %v388 = vld [vmem:[#allocation5 + $0x180] sm:$0xff]
        %v389 = vld [vmem:[#allocation5 + $0x188] sm:$0xff]
        %v390 = vld [vmem:[#allocation5 + $0x190] sm:$0xff]
        %v391 = vld [vmem:[#allocation5 + $0x198] sm:$0xff]
        %v392 = vld [vmem:[#allocation5 + $0x1a0] sm:$0xff]
        %v393 = vld [vmem:[#allocation5 + $0x1a8] sm:$0xff]
        %v394 = vld [vmem:[#allocation5 + $0x1b0] sm:$0xff]
        %v395 = vld [vmem:[#allocation5 + $0x1b8] sm:$0xff]
        %v396 = vld [vmem:[#allocation5 + $0x1c0] sm:$0xff]
        %v397 = vld [vmem:[#allocation5 + $0x1c8] sm:$0xff]
        %v398 = vld [vmem:[#allocation5 + $0x1d0] sm:$0xff]
        %v399 = vld [vmem:[#allocation5 + $0x1d8] sm:$0xff]
        %v400 = vld [vmem:[#allocation5 + $0x1e0] sm:$0xff]
        %v401 = vld [vmem:[#allocation5 + $0x1e8] sm:$0xff]
        %v402 = vld [vmem:[#allocation5 + $0x1f0] sm:$0xff]
        %v403 = vld [vmem:[#allocation5 + $0x1f8] sm:$0xff]
        %v404 = vld [vmem:[%s2] sm:$0x3]
        %v406 = vlaneseq
        %v407 = vshrl.u32 %v406, 7
        %v408 = vsub.s32 0, %v407
        %v409 = vrot.slane %v404, %v408
        %v410 = vlaneseq
        %v411 = vshrl.u32 %v410, 7
        %v412 = vsub.s32 1, %v411
        %v413 = vrot.slane %v404, %v412
        %v480 = vunpack.c.l.b16 %v340
        %v481 = vunpack.c.h.b16 %v340
        %v482 = vunpack.c.l.b16 %v341
        %v483 = vunpack.c.h.b16 %v341
        %v484 = vunpack.c.l.b16 %v342
        %v485 = vunpack.c.h.b16 %v342
        %v486 = vunpack.c.l.b16 %v343
        %v487 = vunpack.c.h.b16 %v343
        %v488 = vunpack.c.l.b16 %v344
        %v489 = vunpack.c.h.b16 %v344
        %v490 = vunpack.c.l.b16 %v345
        %v491 = vunpack.c.h.b16 %v345
        %v492 = vunpack.c.l.b16 %v346
        %v493 = vunpack.c.h.b16 %v346
        %v494 = vunpack.c.l.b16 %v347
        %v495 = vunpack.c.h.b16 %v347
        %v496 = vunpack.c.l.b16 %v348
        %v497 = vunpack.c.h.b16 %v348
        %v498 = vunpack.c.l.b16 %v349
        %v499 = vunpack.c.h.b16 %v349
        %v500 = vunpack.c.l.b16 %v350
        %v501 = vunpack.c.h.b16 %v350
        %v502 = vunpack.c.l.b16 %v351
        %v503 = vunpack.c.h.b16 %v351
        %v504 = vunpack.c.l.b16 %v352
        %v505 = vunpack.c.h.b16 %v352
        %v506 = vunpack.c.l.b16 %v353
        %v507 = vunpack.c.h.b16 %v353
        %v508 = vunpack.c.l.b16 %v354
        %v509 = vunpack.c.h.b16 %v354
        %v510 = vunpack.c.l.b16 %v355
        %v511 = vunpack.c.h.b16 %v355
        %v512 = vunpack.c.l.b16 %v356
        %v513 = vunpack.c.h.b16 %v356
        %v514 = vunpack.c.l.b16 %v357
        %v515 = vunpack.c.h.b16 %v357
        %v516 = vunpack.c.l.b16 %v358
        %v517 = vunpack.c.h.b16 %v358
        %v518 = vunpack.c.l.b16 %v359
        %v519 = vunpack.c.h.b16 %v359
        %v520 = vunpack.c.l.b16 %v360
        %v521 = vunpack.c.h.b16 %v360
        %v522 = vunpack.c.l.b16 %v361
        %v523 = vunpack.c.h.b16 %v361
        %v524 = vunpack.c.l.b16 %v362
        %v525 = vunpack.c.h.b16 %v362
        %v526 = vunpack.c.l.b16 %v363
        %v527 = vunpack.c.h.b16 %v363
        %v528 = vunpack.c.l.b16 %v364
        %v529 = vunpack.c.h.b16 %v364
        %v530 = vunpack.c.l.b16 %v365
        %v531 = vunpack.c.h.b16 %v365
        %v532 = vunpack.c.l.b16 %v366
        %v533 = vunpack.c.h.b16 %v366
        %v534 = vunpack.c.l.b16 %v367
        %v535 = vunpack.c.h.b16 %v367
        %v536 = vunpack.c.l.b16 %v368
        %v537 = vunpack.c.h.b16 %v368
        %v538 = vunpack.c.l.b16 %v369
        %v539 = vunpack.c.h.b16 %v369
        %v540 = vunpack.c.l.b16 %v370
        %v541 = vunpack.c.h.b16 %v370
        %v542 = vunpack.c.l.b16 %v371
        %v543 = vunpack.c.h.b16 %v371
        %v544 = vunpack.c.l.b16 %v372
        %v545 = vunpack.c.h.b16 %v372
        %v546 = vunpack.c.l.b16 %v373
        %v547 = vunpack.c.h.b16 %v373
        %v548 = vunpack.c.l.b16 %v374
        %v549 = vunpack.c.h.b16 %v374
        %v550 = vunpack.c.l.b16 %v375
        %v551 = vunpack.c.h.b16 %v375
        %v552 = vunpack.c.l.b16 %v376
        %v553 = vunpack.c.h.b16 %v376
        %v554 = vunpack.c.l.b16 %v377
        %v555 = vunpack.c.h.b16 %v377
        %v556 = vunpack.c.l.b16 %v378
        %v557 = vunpack.c.h.b16 %v378
        %v558 = vunpack.c.l.b16 %v379
        %v559 = vunpack.c.h.b16 %v379
        %v560 = vunpack.c.l.b16 %v380
        %v561 = vunpack.c.h.b16 %v380
        %v562 = vunpack.c.l.b16 %v381
        %v563 = vunpack.c.h.b16 %v381
        %v564 = vunpack.c.l.b16 %v382
        %v565 = vunpack.c.h.b16 %v382
        %v566 = vunpack.c.l.b16 %v383
        %v567 = vunpack.c.h.b16 %v383
        %v568 = vunpack.c.l.b16 %v384
        %v569 = vunpack.c.h.b16 %v384
        %v570 = vunpack.c.l.b16 %v385
        %v571 = vunpack.c.h.b16 %v385
        %v572 = vunpack.c.l.b16 %v386
        %v573 = vunpack.c.h.b16 %v386
        %v574 = vunpack.c.l.b16 %v387
        %v575 = vunpack.c.h.b16 %v387
        %v576 = vunpack.c.l.b16 %v388
        %v577 = vunpack.c.h.b16 %v388
        %v578 = vunpack.c.l.b16 %v389
        %v579 = vunpack.c.h.b16 %v389
        %v580 = vunpack.c.l.b16 %v390
        %v581 = vunpack.c.h.b16 %v390
        %v582 = vunpack.c.l.b16 %v391
        %v583 = vunpack.c.h.b16 %v391
        %v584 = vunpack.c.l.b16 %v392
        %v585 = vunpack.c.h.b16 %v392
        %v586 = vunpack.c.l.b16 %v393
        %v587 = vunpack.c.h.b16 %v393
        %v588 = vunpack.c.l.b16 %v394
        %v589 = vunpack.c.h.b16 %v394
        %v590 = vunpack.c.l.b16 %v395
        %v591 = vunpack.c.h.b16 %v395
        %v592 = vunpack.c.l.b16 %v396
        %v593 = vunpack.c.h.b16 %v396
        %v594 = vunpack.c.l.b16 %v397
        %v595 = vunpack.c.h.b16 %v397
        %v596 = vunpack.c.l.b16 %v398
        %v597 = vunpack.c.h.b16 %v398
        %v598 = vunpack.c.l.b16 %v399
        %v599 = vunpack.c.h.b16 %v399
        %v600 = vunpack.c.l.b16 %v400
        %v601 = vunpack.c.h.b16 %v400
        %v602 = vunpack.c.l.b16 %v401
        %v603 = vunpack.c.h.b16 %v401
        %v604 = vunpack.c.l.b16 %v402
        %v605 = vunpack.c.h.b16 %v402
        %v606 = vunpack.c.l.b16 %v403
        %v607 = vunpack.c.h.b16 %v403
        %v608 = vpack.c.b16 %v482, %v480
        %v609 = vpack.c.b16 %v483, %v481
        %v610 = vpack.c.b16 %v486, %v484
        %v611 = vpack.c.b16 %v487, %v485
        %v612 = vpack.c.b16 %v490, %v488
        %v613 = vpack.c.b16 %v491, %v489
        %v614 = vpack.c.b16 %v494, %v492
        %v615 = vpack.c.b16 %v495, %v493
        %v616 = vpack.c.b16 %v498, %v496
        %v617 = vpack.c.b16 %v499, %v497
        %v618 = vpack.c.b16 %v502, %v500
        %v619 = vpack.c.b16 %v503, %v501
        %v620 = vpack.c.b16 %v506, %v504
        %v621 = vpack.c.b16 %v507, %v505
        %v622 = vpack.c.b16 %v510, %v508
        %v623 = vpack.c.b16 %v511, %v509
        %v624 = vpack.c.b16 %v514, %v512
        %v625 = vpack.c.b16 %v515, %v513
        %v626 = vpack.c.b16 %v518, %v516
        %v627 = vpack.c.b16 %v519, %v517
        %v628 = vpack.c.b16 %v522, %v520
        %v629 = vpack.c.b16 %v523, %v521
        %v630 = vpack.c.b16 %v526, %v524
        %v631 = vpack.c.b16 %v527, %v525
        %v632 = vpack.c.b16 %v530, %v528
        %v633 = vpack.c.b16 %v531, %v529
        %v634 = vpack.c.b16 %v534, %v532
        %v635 = vpack.c.b16 %v535, %v533
        %v636 = vpack.c.b16 %v538, %v536
        %v637 = vpack.c.b16 %v539, %v537
        %v638 = vpack.c.b16 %v542, %v540
        %v639 = vpack.c.b16 %v543, %v541
        %v640 = vpack.c.b16 %v546, %v544
        %v641 = vpack.c.b16 %v547, %v545
        %v642 = vpack.c.b16 %v550, %v548
        %v643 = vpack.c.b16 %v551, %v549
        %v644 = vpack.c.b16 %v554, %v552
        %v645 = vpack.c.b16 %v555, %v553
        %v646 = vpack.c.b16 %v558, %v556
        %v647 = vpack.c.b16 %v559, %v557
        %v648 = vpack.c.b16 %v562, %v560
        %v649 = vpack.c.b16 %v563, %v561
        %v650 = vpack.c.b16 %v566, %v564
        %v651 = vpack.c.b16 %v567, %v565
        %v652 = vpack.c.b16 %v570, %v568
        %v653 = vpack.c.b16 %v571, %v569
        %v654 = vpack.c.b16 %v574, %v572
        %v655 = vpack.c.b16 %v575, %v573
        %v656 = vpack.c.b16 %v578, %v576
        %v657 = vpack.c.b16 %v579, %v577
        %v658 = vpack.c.b16 %v582, %v580
        %v659 = vpack.c.b16 %v583, %v581
        %v660 = vpack.c.b16 %v586, %v584
        %v661 = vpack.c.b16 %v587, %v585
        %v662 = vpack.c.b16 %v590, %v588
        %v663 = vpack.c.b16 %v591, %v589
        %v664 = vpack.c.b16 %v594, %v592
        %v665 = vpack.c.b16 %v595, %v593
        %v666 = vpack.c.b16 %v598, %v596
        %v667 = vpack.c.b16 %v599, %v597
        %v668 = vpack.c.b16 %v602, %v600
        %v669 = vpack.c.b16 %v603, %v601
        %v670 = vpack.c.b16 %v606, %v604
        %v671 = vpack.c.b16 %v607, %v605
        %736 = vmatprep.subr.bf16.mxu0 %v609
        %737 = vmatpush1.bf16.msra.mxu0 %v608
        %738 = vmatprep.subr.bf16.mxu0 %v611
        %739 = vmatpush1.bf16.msra.mxu0 %v610
        %740 = vmatprep.subr.bf16.mxu0 %v613
        %741 = vmatpush1.bf16.msra.mxu0 %v612
        %742 = vmatprep.subr.bf16.mxu0 %v615
        %743 = vmatpush1.bf16.msra.mxu0 %v614
        %744 = vmatprep.subr.bf16.mxu0 %v617
        %745 = vmatpush1.bf16.msra.mxu0 %v616
        %746 = vmatprep.subr.bf16.mxu0 %v619
        %747 = vmatpush1.bf16.msra.mxu0 %v618
        %748 = vmatprep.subr.bf16.mxu0 %v621
        %749 = vmatpush1.bf16.msra.mxu0 %v620
        %750 = vmatprep.subr.bf16.mxu0 %v623
        %751 = vmatpush1.bf16.msra.mxu0 %v622
        %752 = vmatprep.subr.bf16.mxu0 %v625
        %753 = vmatpush1.bf16.msra.mxu0 %v624
        %754 = vmatprep.subr.bf16.mxu0 %v627
        %755 = vmatpush1.bf16.msra.mxu0 %v626
        %756 = vmatprep.subr.bf16.mxu0 %v629
        %757 = vmatpush1.bf16.msra.mxu0 %v628
        %758 = vmatprep.subr.bf16.mxu0 %v631
        %759 = vmatpush1.bf16.msra.mxu0 %v630
        %760 = vmatprep.subr.bf16.mxu0 %v633
        %761 = vmatpush1.bf16.msra.mxu0 %v632
        %762 = vmatprep.subr.bf16.mxu0 %v635
        %763 = vmatpush1.bf16.msra.mxu0 %v634
        %764 = vmatprep.subr.bf16.mxu0 %v637
        %765 = vmatpush1.bf16.msra.mxu0 %v636
        %766 = vmatprep.subr.bf16.mxu0 %v639
        %767 = vmatpush1.bf16.msra.mxu0 %v638
        %768 = vmatprep.mubr.bf16.mxu0 %v325
        %769 = vmatmul.mubr.bf16.gmra.mrb[0].mxu0 %v324
        %v770 = vpop.f32.mrb[0].mxu0
        %v771 = vadd.f32 %v409, %v770
        %v772 = vpop.f32.mrb[0].mxu0
        %v773 = vadd.f32 %v413, %v772
        %v774 = vpop.f32.mrb[0].mxu0
        %v775 = vadd.f32 %v409, %v774
        %v776 = vpop.f32.mrb[0].mxu0
        %v777 = vadd.f32 %v413, %v776
        %778 = vmatprep.mubr.bf16.mxu0 %v329
        %779 = vmatmul.mubr.bf16.gmra.mrb[0].mxu0 %v328
        %v780 = vpop.f32.mrb[0].mxu0
        %v781 = vadd.f32 %v409, %v780
        %v782 = vpop.f32.mrb[0].mxu0
        %v783 = vadd.f32 %v413, %v782
        %v784 = vpop.f32.mrb[0].mxu0
        %v785 = vadd.f32 %v409, %v784
        %v786 = vpop.f32.mrb[0].mxu0
        %v787 = vadd.f32 %v413, %v786
        %788 = vmatprep.mubr.bf16.mxu0 %v333
        %789 = vmatmul.mubr.bf16.gmra.mrb[0].mxu0 %v332
        %v790 = vpop.f32.mrb[0].mxu0
        %v791 = vadd.f32 %v409, %v790
        %v792 = vpop.f32.mrb[0].mxu0
        %v793 = vadd.f32 %v413, %v792
        %v794 = vpop.f32.mrb[0].mxu0
        %v795 = vadd.f32 %v409, %v794
        %v796 = vpop.f32.mrb[0].mxu0
        %v797 = vadd.f32 %v413, %v796
        %798 = vmatprep.mubr.bf16.mxu0 %v337
        %799 = vmatmul.mubr.bf16.gmra.mrb[0].mxu0 %v336
        %v800 = vpop.f32.mrb[0].mxu0
        %v801 = vadd.f32 %v409, %v800
        %v802 = vpop.f32.mrb[0].mxu0
        %v803 = vadd.f32 %v413, %v802
        %v804 = vpop.f32.mrb[0].mxu0
        %v805 = vadd.f32 %v409, %v804
        %v806 = vpop.f32.mrb[0].mxu0
        %v807 = vadd.f32 %v413, %v806
        %808 = vdwg.mxu0
        %809 = vmatprep.subr.bf16.mxu0 %v641
        %810 = vmatpush1.bf16.msra.mxu0 %v640
        %811 = vmatprep.subr.bf16.mxu0 %v643
        %812 = vmatpush1.bf16.msra.mxu0 %v642
        %813 = vmatprep.subr.bf16.mxu0 %v645
        %814 = vmatpush1.bf16.msra.mxu0 %v644
        %815 = vmatprep.subr.bf16.mxu0 %v647
        %816 = vmatpush1.bf16.msra.mxu0 %v646
        %817 = vmatprep.subr.bf16.mxu0 %v649
        %818 = vmatpush1.bf16.msra.mxu0 %v648
        %819 = vmatprep.subr.bf16.mxu0 %v651
        %820 = vmatpush1.bf16.msra.mxu0 %v650
        %821 = vmatprep.subr.bf16.mxu0 %v653
        %822 = vmatpush1.bf16.msra.mxu0 %v652
        %823 = vmatprep.subr.bf16.mxu0 %v655
        %824 = vmatpush1.bf16.msra.mxu0 %v654
        %825 = vmatprep.subr.bf16.mxu0 %v657
        %826 = vmatpush1.bf16.msra.mxu0 %v656
        %827 = vmatprep.subr.bf16.mxu0 %v659
        %828 = vmatpush1.bf16.msra.mxu0 %v658
        %829 = vmatprep.subr.bf16.mxu0 %v661
        %830 = vmatpush1.bf16.msra.mxu0 %v660
        %831 = vmatprep.subr.bf16.mxu0 %v663
        %832 = vmatpush1.bf16.msra.mxu0 %v662
        %833 = vmatprep.subr.bf16.mxu0 %v665
        %834 = vmatpush1.bf16.msra.mxu0 %v664
        %835 = vmatprep.subr.bf16.mxu0 %v667
        %836 = vmatpush1.bf16.msra.mxu0 %v666
        %837 = vmatprep.subr.bf16.mxu0 %v669
        %838 = vmatpush1.bf16.msra.mxu0 %v668
        %839 = vmatprep.subr.bf16.mxu0 %v671
        %840 = vmatpush1.bf16.msra.mxu0 %v670
        %841 = vmatprep.mubr.bf16.mxu0 %v327
        %842 = vmatmul.mubr.bf16.gmra.mrb[0].mxu0 %v326
        %v843 = vpop.f32.mrb[0].mxu0
        %v844 = vadd.f32 %v771, %v843
        %v845 = vpop.f32.mrb[0].mxu0
        %v846 = vadd.f32 %v773, %v845
        %v847 = vpop.f32.mrb[0].mxu0
        %v848 = vadd.f32 %v775, %v847
        %v849 = vpop.f32.mrb[0].mxu0
        %v850 = vadd.f32 %v777, %v849
        %851 = vmatprep.mubr.bf16.mxu0 %v331
        %852 = vmatmul.mubr.bf16.gmra.mrb[0].mxu0 %v330
        %v853 = vpop.f32.mrb[0].mxu0
        %v854 = vadd.f32 %v781, %v853
        %v855 = vpop.f32.mrb[0].mxu0
        %v856 = vadd.f32 %v783, %v855
        %v857 = vpop.f32.mrb[0].mxu0
        %v858 = vadd.f32 %v785, %v857
        %v859 = vpop.f32.mrb[0].mxu0
        %v860 = vadd.f32 %v787, %v859
        %861 = vmatprep.mubr.bf16.mxu0 %v335
        %862 = vmatmul.mubr.bf16.gmra.mrb[0].mxu0 %v334
        %v863 = vpop.f32.mrb[0].mxu0
        %v864 = vadd.f32 %v791, %v863
        %v865 = vpop.f32.mrb[0].mxu0
        %v866 = vadd.f32 %v793, %v865
        %v867 = vpop.f32.mrb[0].mxu0
        %v868 = vadd.f32 %v795, %v867
        %v869 = vpop.f32.mrb[0].mxu0
        %v870 = vadd.f32 %v797, %v869
        %871 = vmatprep.mubr.bf16.mxu0 %v339
        %872 = vmatmul.mubr.bf16.gmra.mrb[0].mxu0 %v338
        %v873 = vpop.f32.mrb[0].mxu0
        %v874 = vadd.f32 %v801, %v873
        %v875 = vpop.f32.mrb[0].mxu0
        %v876 = vadd.f32 %v803, %v875
        %v877 = vpop.f32.mrb[0].mxu0
        %v878 = vadd.f32 %v805, %v877
        %v879 = vpop.f32.mrb[0].mxu0
        %v880 = vadd.f32 %v807, %v879
        %881 = vdwg.mxu0
        %v882 = vmax.f32 %v844, 0.0
        %v883 = vmax.f32 %v846, 0.0
        %v884 = vmax.f32 %v848, 0.0
        %v885 = vmax.f32 %v850, 0.0
        %v886 = vmax.f32 %v854, 0.0
        %v887 = vmax.f32 %v856, 0.0
        %v888 = vmax.f32 %v858, 0.0
        %v889 = vmax.f32 %v860, 0.0
        %v890 = vmax.f32 %v864, 0.0
        %v891 = vmax.f32 %v866, 0.0
        %v892 = vmax.f32 %v868, 0.0
        %v893 = vmax.f32 %v870, 0.0
        %v894 = vmax.f32 %v874, 0.0
        %v895 = vmax.f32 %v876, 0.0
        %v896 = vmax.f32 %v878, 0.0
        %v897 = vmax.f32 %v880, 0.0
        %v898 = vpack.c.bf16 %v884, %v882
        %v899 = vpack.c.bf16 %v885, %v883
        %v900 = vpack.c.bf16 %v888, %v886
        %v901 = vpack.c.bf16 %v889, %v887
        %v902 = vpack.c.bf16 %v892, %v890
        %v903 = vpack.c.bf16 %v893, %v891
        %v904 = vpack.c.bf16 %v896, %v894
        %v905 = vpack.c.bf16 %v897, %v895
        %v906 = vld [vmem:[#allocation7] sm:$0xf]
        %v907 = vld [vmem:[#allocation7 + $0x4] sm:$0xf]
        %v908 = vld [vmem:[#allocation7 + $0x8] sm:$0xf]
        %v909 = vld [vmem:[#allocation7 + $0xc] sm:$0xf]
        %v910 = vld [vmem:[#allocation7 + $0x10] sm:$0xf]
        %v911 = vld [vmem:[#allocation7 + $0x14] sm:$0xf]
        %v912 = vld [vmem:[#allocation7 + $0x18] sm:$0xf]
        %v913 = vld [vmem:[#allocation7 + $0x1c] sm:$0xf]
        %v914 = vld [vmem:[#allocation7 + $0x20] sm:$0xf]
        %v915 = vld [vmem:[#allocation7 + $0x24] sm:$0xf]
        %v916 = vld [vmem:[#allocation7 + $0x28] sm:$0xf]
        %v917 = vld [vmem:[#allocation7 + $0x2c] sm:$0xf]
        %v918 = vld [vmem:[#allocation7 + $0x30] sm:$0xf]
        %v919 = vld [vmem:[#allocation7 + $0x34] sm:$0xf]
        %v920 = vld [vmem:[#allocation7 + $0x38] sm:$0xf]
        %v921 = vld [vmem:[#allocation7 + $0x3c] sm:$0xf]
        %v922 = vld [vmem:[#allocation7 + $0x40] sm:$0xf]
        %v923 = vld [vmem:[#allocation7 + $0x44] sm:$0xf]
        %v924 = vld [vmem:[#allocation7 + $0x48] sm:$0xf]
        %v925 = vld [vmem:[#allocation7 + $0x4c] sm:$0xf]
        %v926 = vld [vmem:[#allocation7 + $0x50] sm:$0xf]
        %v927 = vld [vmem:[#allocation7 + $0x54] sm:$0xf]
        %v928 = vld [vmem:[#allocation7 + $0x58] sm:$0xf]
        %v929 = vld [vmem:[#allocation7 + $0x5c] sm:$0xf]
        %v930 = vld [vmem:[#allocation7 + $0x60] sm:$0xf]
        %v931 = vld [vmem:[#allocation7 + $0x64] sm:$0xf]
        %v932 = vld [vmem:[#allocation7 + $0x68] sm:$0xf]
        %v933 = vld [vmem:[#allocation7 + $0x6c] sm:$0xf]
        %v934 = vld [vmem:[#allocation7 + $0x70] sm:$0xf]
        %v935 = vld [vmem:[#allocation7 + $0x74] sm:$0xf]
        %v936 = vld [vmem:[#allocation7 + $0x78] sm:$0xf]
        %v937 = vld [vmem:[#allocation7 + $0x7c] sm:$0xf]
        %v938 = vld [vmem:[%s4] sm:$0x1]
        %v940 = vlaneseq
        %v941 = vshrl.u32 %v940, 7
        %v942 = vsub.s32 0, %v941
        %v943 = vrot.slane %v938, %v942
        %v977 = vunpack.c.l.b16 %v906
        %v978 = vunpack.c.l.b16 %v907
        %v979 = vunpack.c.l.b16 %v908
        %v980 = vunpack.c.l.b16 %v909
        %v981 = vunpack.c.l.b16 %v910
        %v982 = vunpack.c.l.b16 %v911
        %v983 = vunpack.c.l.b16 %v912
        %v984 = vunpack.c.l.b16 %v913
        %v985 = vunpack.c.l.b16 %v914
        %v986 = vunpack.c.l.b16 %v915
        %v987 = vunpack.c.l.b16 %v916
        %v988 = vunpack.c.l.b16 %v917
        %v989 = vunpack.c.l.b16 %v918
        %v990 = vunpack.c.l.b16 %v919
        %v991 = vunpack.c.l.b16 %v920
        %v992 = vunpack.c.l.b16 %v921
        %v993 = vunpack.c.l.b16 %v922
        %v994 = vunpack.c.l.b16 %v923
        %v995 = vunpack.c.l.b16 %v924
        %v996 = vunpack.c.l.b16 %v925
        %v997 = vunpack.c.l.b16 %v926
        %v998 = vunpack.c.l.b16 %v927
        %v999 = vunpack.c.l.b16 %v928
        %v1000 = vunpack.c.l.b16 %v929
        %v1001 = vunpack.c.l.b16 %v930
        %v1002 = vunpack.c.l.b16 %v931
        %v1003 = vunpack.c.l.b16 %v932
        %v1004 = vunpack.c.l.b16 %v933
        %v1005 = vunpack.c.l.b16 %v934
        %v1006 = vunpack.c.l.b16 %v935
        %v1007 = vunpack.c.l.b16 %v936
        %v1008 = vunpack.c.l.b16 %v937
        %v1009 = vpack.c.b16 %v978, %v977
        %v1010 = vpack.c.b16 %v980, %v979
        %v1011 = vpack.c.b16 %v982, %v981
        %v1012 = vpack.c.b16 %v984, %v983
        %v1013 = vpack.c.b16 %v986, %v985
        %v1014 = vpack.c.b16 %v988, %v987
        %v1015 = vpack.c.b16 %v990, %v989
        %v1016 = vpack.c.b16 %v992, %v991
        %v1017 = vpack.c.b16 %v994, %v993
        %v1018 = vpack.c.b16 %v996, %v995
        %v1019 = vpack.c.b16 %v998, %v997
        %v1020 = vpack.c.b16 %v1000, %v999
        %v1021 = vpack.c.b16 %v1002, %v1001
        %v1022 = vpack.c.b16 %v1004, %v1003
        %v1023 = vpack.c.b16 %v1006, %v1005
        %v1024 = vpack.c.b16 %v1008, %v1007
        %1041 = vmatprep.subr.bf16.mxu0 0
        %1042 = vmatpush1.bf16.msra.mxu0 %v1009
        %1043 = vmatprep.subr.bf16.mxu0 0
        %1044 = vmatpush1.bf16.msra.mxu0 %v1010
        %1045 = vmatprep.subr.bf16.mxu0 0
        %1046 = vmatpush1.bf16.msra.mxu0 %v1011
        %1047 = vmatprep.subr.bf16.mxu0 0
        %1048 = vmatpush1.bf16.msra.mxu0 %v1012
        %1049 = vmatprep.subr.bf16.mxu0 0
        %1050 = vmatpush1.bf16.msra.mxu0 %v1013
        %1051 = vmatprep.subr.bf16.mxu0 0
        %1052 = vmatpush1.bf16.msra.mxu0 %v1014
        %1053 = vmatprep.subr.bf16.mxu0 0
        %1054 = vmatpush1.bf16.msra.mxu0 %v1015
        %1055 = vmatprep.subr.bf16.mxu0 0
        %1056 = vmatpush1.bf16.msra.mxu0 %v1016
        %1057 = vmatprep.subr.bf16.mxu0 0
        %1058 = vmatpush1.bf16.msra.mxu0 %v1017
        %1059 = vmatprep.subr.bf16.mxu0 0
        %1060 = vmatpush1.bf16.msra.mxu0 %v1018
        %1061 = vmatprep.subr.bf16.mxu0 0
        %1062 = vmatpush1.bf16.msra.mxu0 %v1019
        %1063 = vmatprep.subr.bf16.mxu0 0
        %1064 = vmatpush1.bf16.msra.mxu0 %v1020
        %1065 = vmatprep.subr.bf16.mxu0 0
        %1066 = vmatpush1.bf16.msra.mxu0 %v1021
        %1067 = vmatprep.subr.bf16.mxu0 0
        %1068 = vmatpush1.bf16.msra.mxu0 %v1022
        %1069 = vmatprep.subr.bf16.mxu0 0
        %1070 = vmatpush1.bf16.msra.mxu0 %v1023
        %1071 = vmatprep.subr.bf16.mxu0 0
        %1072 = vmatpush1.bf16.msra.mxu0 %v1024
        %1073 = vmatprep.mubr.bf16.mxu0 %v899
        %1074 = vmatmul.mubr.bf16.gmra.mrb[0].mxu0 %v898
        %v1075 = vpop.f32.mrb[0].mxu0
        %v1076 = vadd.f32 %v943, %v1075
        %v1077 = vpop.f32.mrb[0].mxu0
        %v1078 = vpop.f32.mrb[0].mxu0
        %v1079 = vadd.f32 %v943, %v1078
        %v1080 = vpop.f32.mrb[0].mxu0
        %1081 = vmatprep.mubr.bf16.mxu0 %v901
        %1082 = vmatmul.mubr.bf16.gmra.mrb[0].mxu0 %v900
        %v1083 = vpop.f32.mrb[0].mxu0
        %v1084 = vadd.f32 %v943, %v1083
        %v1085 = vpop.f32.mrb[0].mxu0
        %v1086 = vpop.f32.mrb[0].mxu0
        %v1087 = vadd.f32 %v943, %v1086
        %v1088 = vpop.f32.mrb[0].mxu0
        %1089 = vmatprep.mubr.bf16.mxu0 %v903
        %1090 = vmatmul.mubr.bf16.gmra.mrb[0].mxu0 %v902
        %v1091 = vpop.f32.mrb[0].mxu0
        %v1092 = vadd.f32 %v943, %v1091
        %v1093 = vpop.f32.mrb[0].mxu0
        %v1094 = vpop.f32.mrb[0].mxu0
        %v1095 = vadd.f32 %v943, %v1094
        %v1096 = vpop.f32.mrb[0].mxu0
        %1097 = vmatprep.mubr.bf16.mxu0 %v905
        %1098 = vmatmul.mubr.bf16.gmra.mrb[0].mxu0 %v904
        %v1099 = vpop.f32.mrb[0].mxu0
        %v1100 = vadd.f32 %v943, %v1099
        %v1101 = vpop.f32.mrb[0].mxu0
        %v1102 = vpop.f32.mrb[0].mxu0
        %v1103 = vadd.f32 %v943, %v1102
        %v1104 = vpop.f32.mrb[0].mxu0
        %1105 = vdwg.mxu0
        %1106 = vst [vmem:[%s279] sm:$0xff] %v1076
        %1107 = vst [vmem:[%s279 + $0x8] sm:$0xff] %v1079
        %1108 = vst [vmem:[%s279 + $0x10] sm:$0xff] %v1084
        %1109 = vst [vmem:[%s279 + $0x18] sm:$0xff] %v1087
        %1110 = vst [vmem:[%s279 + $0x20] sm:$0xff] %v1092
        %1111 = vst [vmem:[%s279 + $0x28] sm:$0xff] %v1095
        %1112 = vst [vmem:[%s279 + $0x30] sm:$0xff] %v1100
        %1113 = vst [vmem:[%s279 + $0x38] sm:$0xff] %v1103
        %s1114 = sand.u32 %s141, 1
        %s1115 = scalar_lea.sflag [#allocation4], %s1114
        %s1116 = sand.u32 %s141, 1
        %s1117 = smul.addr %s1116, 64
        %s1118 = scalar_lea.vmem [#allocation8], %s1117
        // Predicated region
        $region53: #{compound_encoder.1} parent=39 // pred_check
          %p1119 = pneg %p151
        $region54: #{compound_encoder.1} parent=39 // pred_check_branch
          %1121 = sbr.rel (%p1119) target = $region56
        $region55: #{compound_encoder.1} parent=39 // pred_region
          %s1122 = smul.u32 8, %s23
          %s1123 = ssub.s32 38, %s1122
          %p1124 = scmp.lt.s32.totalorder %s1123, 8
          %s1125 = scalar_select %p1124, %s1123, 8
          %s1126 = smul.u32 128, %s1125
          %s1128 = ssub.s32 1024, %s1126
          %1129 = vsyncadd %s1115, %s1128
          %p1130 = scmp.ne.s32.totalorder 0, %s1126
          %s1131 = smul.addr %s1122, 128
          %s1132 = scalar_lea.hbm %s5, %s1131
          %s1133 = smul.u32 8, %s1125
          %s1134 = sshll.u32 %s1118, 4
          %s1135 = int_to_ptr.vmem [resolvable:$true] %s1134
          %s1136 = sshll.u32 %s1133, 4
          %1140 = dma.vmem_to_hbm [thread:$0]  (%p1130), %s1135, %s1136, %s1132, %s1115, 128, 128, 8
        $region56: #{compound_encoder.1} parent=39 // pred_fallthru
          _
      $region40: #{compound_encoder.1} parent=5 // pred_fallthru
        _
      %p1141 = scmp.le.s32.totalorder 2, %s18
      // Predicated region
      $region57: #{compound_encoder.1} parent=5 // pred_check
        %p1142 = pneg %p1141
      $region58: #{compound_encoder.1} parent=5 // pred_check_branch
        %1144 = sbr.rel (%p1142) target = $region60
      $region59: #{compound_encoder.1} parent=5 // pred_region
        %s1145 = ssub.s32 %s18, 2
        // Predicated region
        $region61: #{compound_encoder.1} parent=59 // pred_check
          %p1146 = pneg %p157
        $region62: #{compound_encoder.1} parent=59 // pred_check_branch
          %1148 = sbr.rel (%p1146) target = $region64
        $region63: #{compound_encoder.1} parent=59 // pred_region
          %s1149 = sand.u32 %s142, 1
          %s1150 = scalar_lea.sflag [#allocation4], %s1149
          %s1151 = sand.u32 %s142, 1
          %s1152 = smul.addr %s1151, 64
          %s1153 = scalar_lea.vmem [#allocation8], %s1152
          %1154 = dma.done %s1150, 1024
        $region64: #{compound_encoder.1} parent=59 // pred_fallthru
          _
      $region60: #{compound_encoder.1} parent=5 // pred_fallthru
        _
    $region6: #{compound_encoder.1} parent=1 // loop_footer
      %s22 = sadd.s32 1, %s18
    $region7: #{compound_encoder.1} parent=1 // loop_footer_branch
      %17 = sbr.rel target = $region3
    $region8: #{compound_encoder.1} parent=1 // loop_exit
      _
    %1155 = vsyncpa [#allocation3], 1
    %s1156 = scalar_lea.sflag [#allocation3], 1
    %1157 = vsyncpa %s1156, 1
    %1158 = vsyncpa [#allocation6], 1
    %1159 = vsyncpa [#allocation4], 1
    %s1160 = scalar_lea.sflag [#allocation4], 1
    %1161 = vsyncpa %s1160, 1

</llo_original>
